<compile_context>
chip_gen: v6e
topology: v6e:2x2x1
jax: 0.10.0
libtpu: 0.0.40
codegen_flags: <defaults>
</compile_context>

<pallas_src>
import jax
import jax.numpy as jnp
from jax.experimental import pallas as pl
from jax.experimental.pallas import tpu as pltpu


_NEG_BIG = -1e30  # masked-score fill (f32); adding O(1) scores leaves it at exactly -1e30


def _round_up(v: int, m: int) -> int:
    return ((v + m - 1) // m) * m


def _tile_config(n: int):
    """Pick tiles / vmem limit from the node count and the chip's VMEM capacity."""
    vmem_cap = 64 << 20                         # conservative (v7x) default
    try:
        vmem_cap = int(pltpu.get_tpu_info().vmem_capacity_bytes)
    except Exception:
        pass
    if n <= 512:
        t = _round_up(max(n, 1), 128)           # single fully aligned tile (int8-safe)
        return dict(tile_i=t, tile_j=t, n_i=t, n_j=t, n_max=t,
                    vmem_limit=min(max(vmem_cap // 2, 16 << 20), 64 << 20))
    if vmem_cap >= (100 << 20):                 # v5e / v6e: 128 MiB physical VMEM
        tile_i, tile_j, vmem_limit = 512, 1024, 96 << 20
    else:                                       # v7x: 64 MiB physical VMEM
        tile_i, tile_j, vmem_limit = 256, 512, 40 << 20
    n_i = _round_up(n, tile_i)                  # rows   -> multiple of tile_i
    n_j = _round_up(n, tile_j)                  # cols   -> multiple of tile_j
    return dict(tile_i=tile_i, tile_j=tile_j, n_i=n_i, n_j=n_j,
                n_max=max(n_i, n_j), vmem_limit=vmem_limit)


def prepare_adjacency(adj_dense, n_nodes: int, cfg):
    """int8-pack + pad the adjacency and compute flat per-(i,j)-tile edge counts.

    Depends only on the graph + tiling, so callers can cache it across forward
    calls (the f32 -> int8 conversion otherwise re-reads the full N^2 matrix).
    """
    tile_i, tile_j, n_i, n_j = cfg["tile_i"], cfg["tile_j"], cfg["n_i"], cfg["n_j"]
    adj_i8 = (adj_dense > 0).astype(jnp.int8)
    if (n_i, n_j) != (n_nodes, n_nodes):
        adj_i8 = jnp.pad(adj_i8, ((0, n_i - n_nodes), (0, n_j - n_nodes)))
    gi, gj = n_i // tile_i, n_j // tile_j
    counts = adj_i8.astype(jnp.int32).reshape(gi, tile_i, gj, tile_j)
    counts = counts.sum(axis=(1, 3)).reshape(-1)     # flat (gi*gj,) int32 for SMEM
    return adj_i8, counts


# ---------------------------------------------------------------------------
# Kernel 1: fused projection for all heads.
#   h_all = [x | 1] @ W_fused_aug       (TP, H*(d+1))  bf16 MXU pass, f32 accumulate
#           (per head: [x @ W_h | 1] -> the ones column later produces the
#            softmax denominator on the MXU in stage 2)
#   sd    = [x | 1] @ [W a_l | W a_r]   (TP, 2H)       f32 (feeds exp / max)
# ---------------------------------------------------------------------------
def _project_kernel(x_ref, wf_ref, wa_ref, h_ref, sd_ref):
    x = x_ref[...]                                                    # (TP, F+1) f32
    h = jnp.dot(x.astype(jnp.bfloat16), wf_ref[...],
                preferred_element_type=jnp.float32)                   # bf16 MXU pass
    h_ref[...] = h.astype(h_ref.dtype)
    sd_ref[...] = jnp.dot(x, wa_ref[...], preferred_element_type=jnp.float32)


# ---------------------------------------------------------------------------
# Kernel 2: block-sparse masked softmax + aggregation, online softmax over j.
#   grid = (i tiles [parallel / core-parallel], j tiles [arbitrary / reduction])
# ---------------------------------------------------------------------------
def _make_attention_kernel(heads: int, d: int):
    d1 = d + 1          # per-head block in h_all / acc is [features | ones]

    def kernel(counts_ref, src_ref, dstt_ref, h_ref, adj_ref, out_ref, m_ref, acc_ref):
        i = pl.program_id(0)
        j = pl.program_id(1)
        nj = pl.num_programs(1)

        @pl.when(j == 0)
        def _init():
            m_ref[...] = jnp.full_like(m_ref, _NEG_BIG)
            acc_ref[...] = jnp.zeros_like(acc_ref)

        # Block-sparsity skip: adjacency tiles with no edges contribute nothing.
        @pl.when(counts_ref[i * nj + j] > 0)
        def _compute():
            src = src_ref[...]                                 # (TI, H)     f32
            dst_t = dstt_ref[...]                              # (H, TJ)     f32
            hj = h_ref[...]                                    # (TJ, H*d1)  bf16
            # additive edge-mask bias, computed once per (i, j) tile
            # (widen-then-compare is the proven lowering; a direct i8 compare
            #  would only save one VPU op per tile)
            edge = adj_ref[...].astype(jnp.float32) > 0.0
            bias = jnp.where(edge, 0.0, _NEG_BIG)              # (TI, TJ)    f32

            # Static unroll is fine for small head counts; for heads >= 4 switch
            # to lax.fori_loop with pl.ds column slices to bound vreg live ranges.
            for h in range(heads):
                e = src[:, h:h + 1] + dst_t[h:h + 1, :]        # (TI, TJ)
                e = jnp.maximum(e, 0.2 * e) + bias             # LeakyReLU(0.2) + mask
                m_prev = m_ref[:, h:h + 1]                     # (TI, 1)
                m_new = jnp.maximum(m_prev, jnp.max(e, axis=1, keepdims=True))
                corr = jnp.exp(m_prev - m_new)
                p = jnp.exp(e - m_new)                         # non-edges -> 0 / wiped by corr
                # MXU does both the aggregation and the softmax denominator: the
                # last column of this head's hj block is all-ones, so pv[:, d]
                # is the row-sum of p.
                pv = jnp.dot(p.astype(hj.dtype), hj[:, h * d1:(h + 1) * d1],
                             preferred_element_type=jnp.float32)          # (TI, d+1)
                acc_ref[:, h * d1:(h + 1) * d1] = (
                    corr * acc_ref[:, h * d1:(h + 1) * d1] + pv)
                m_ref[:, h:h + 1] = m_new

        @pl.when(j == nj - 1)
        def _finalize():
            for h in range(heads):
                l = acc_ref[:, h * d1 + d:(h + 1) * d1]        # (TI, 1) denominator
                inv = pl.reciprocal(l + 1e-16, approx=True)
                # rows with no outgoing edges (incl. padding) -> zero rows, like spmm
                inv = jnp.where(m_ref[:, h:h + 1] > 0.5 * _NEG_BIG, inv, 0.0)
                out_ref[:, h * d:(h + 1) * d] = (
                    acc_ref[:, h * d1:h * d1 + d] * inv).astype(out_ref.dtype)

    return kernel


def graph_att_conv(x, adj_dense, weights, a_l, a_r, *, prepared_adj=None):
    """Multi-head GAT forward.

    x:            (N, F_in)  float32
    adj_dense:    (N, N)     0/1 mask (any real dtype)
    weights:      (H, F_in, d)
    a_l, a_r:     (H, 1, d)
    prepared_adj: optional cached output of prepare_adjacency(adj_dense, N, cfg)
    returns:      (N, H*d)   float32, head 0's features first
    """
    N, f_in = x.shape
    heads, _, d = weights.shape
    d1 = d + 1
    hd = heads * d
    hd1 = heads * d1

    cfg = _tile_config(N)
    tile_i, tile_j = cfg["tile_i"], cfg["tile_j"]
    n_i, n_j, n_max = cfg["n_i"], cfg["n_j"], cfg["n_max"]
    vmem_limit = cfg["vmem_limit"]

    if prepared_adj is None:
        prepared_adj = prepare_adjacency(adj_dense, N, cfg)
    adj_i8, counts = prepared_adj

    # ---- fused weights -------------------------------------------------------
    prec = jax.lax.Precision.HIGHEST
    # per-head augmented projection [[W_h, 0], [0, 1]]: the constant-1 input
    # feature yields an all-ones column per head block of h_all.
    w_head = jnp.concatenate(
        [weights, jnp.zeros((heads, f_in, 1), weights.dtype)], axis=2)       # (H,F,d+1)
    ones_row = jnp.concatenate(
        [jnp.zeros((heads, 1, d), weights.dtype),
         jnp.ones((heads, 1, 1), weights.dtype)], axis=2)                    # (H,1,d+1)
    w_aug = jnp.concatenate([w_head, ones_row], axis=1)                      # (H,F+1,d+1)
    w_fused = jnp.transpose(w_aug, (1, 0, 2)).reshape(f_in + 1, hd1)
    w_fused = w_fused.astype(jnp.bfloat16)                                   # MXU bf16 operand
    # attention vectors folded into the projection: src = x @ (W_h a_l_h), etc.
    w_al = jnp.einsum("hfd,hd->fh", weights, a_l[:, 0, :], precision=prec)   # (F, H)
    w_ar = jnp.einsum("hfd,hd->fh", weights, a_r[:, 0, :], precision=prec)   # (F, H)
    w_attn = jnp.pad(jnp.concatenate([w_al, w_ar], axis=1), ((0, 1), (0, 0)))  # (F+1, 2H)

    # ---- padded, augmented node features -------------------------------------
    x_pad = x if n_max == N else jnp.pad(x, ((0, n_max - N), (0, 0)))
    x_aug = jnp.concatenate([x_pad, jnp.ones((n_max, 1), x.dtype)], axis=1)  # (n_max, F+1)

    # stage-1 row tile: largest power-of-two block (<= 512) dividing n_max
    tile_p = 512
    while n_max % tile_p:
        tile_p //= 2

    # ---- stage 1: fused projection (one bf16 MXU pass + one small f32 pass) --
    h_all, sd = pl.pallas_call(
        _project_kernel,
        out_shape=(
            jax.ShapeDtypeStruct((n_max, hd1), jnp.bfloat16),
            jax.ShapeDtypeStruct((n_max, 2 * heads), jnp.float32),
        ),
        grid_spec=pltpu.PrefetchScalarGridSpec(
            num_scalar_prefetch=0,
            grid=(n_max // tile_p,),
            in_specs=[
                pl.BlockSpec((tile_p, f_in + 1), lambda p: (p, 0)),
                pl.BlockSpec((f_in + 1, hd1), lambda p: (0, 0)),
                pl.BlockSpec((f_in + 1, 2 * heads), lambda p: (0, 0)),
            ],
            out_specs=(
                pl.BlockSpec((tile_p, hd1), lambda p: (p, 0)),
                pl.BlockSpec((tile_p, 2 * heads), lambda p: (p, 0)),
            ),
        ),
        compiler_params=pltpu.CompilerParams(
            dimension_semantics=("parallel",),
            vmem_limit_bytes=vmem_limit,
        ),
    )(x_aug, w_fused, w_attn)

    src = sd[:, :heads]                    # (n_max, H) f32
    dst_t = sd[:, heads:].T                # (H, n_max) f32: lane-axis layout for stage 2

    # ---- stage 2: block-sparse masked softmax + aggregation ------------------
    grid_i, grid_j = n_i // tile_i, n_j // tile_j
    if grid_i >= 2:
        # engage both v7x TensorCores on the independent i axis
        dims2 = (pltpu.CORE_PARALLEL, pltpu.ARBITRARY)
    else:
        dims2 = ("parallel", "arbitrary")

    out_pad = pl.pallas_call(
        _make_attention_kernel(heads, d),
        out_shape=jax.ShapeDtypeStruct((n_i, hd), jnp.float32),
        grid_spec=pltpu.PrefetchScalarGridSpec(
            num_scalar_prefetch=1,                               # per-tile edge counts -> SMEM
            grid=(grid_i, grid_j),
            in_specs=[
                pl.BlockSpec((tile_i, heads), lambda i, j, cnt: (i, 0)),     # src   (i only)
                pl.BlockSpec((heads, tile_j), lambda i, j, cnt: (0, j)),     # dst^T (j only)
                pl.BlockSpec((tile_j, hd1), lambda i, j, cnt: (j, 0)),       # h_all (j only, bf16)
                pl.BlockSpec((tile_i, tile_j), lambda i, j, cnt: (i, j)),    # adjacency (int8)
            ],
            out_specs=pl.BlockSpec((tile_i, hd), lambda i, j, cnt: (i, 0)),  # lane-dense (N, H*d)
            scratch_shapes=[
                pltpu.VMEM((tile_i, heads), jnp.float32),   # running row max (heads on lanes)
                pltpu.VMEM((tile_i, hd1), jnp.float32),     # lane-dense [acc | denom] per head
            ],
        ),
        compiler_params=pltpu.CompilerParams(
            dimension_semantics=dims2,
            vmem_limit_bytes=vmem_limit,
        ),
    )(counts, src, dst_t, h_all, adj_i8)

    return out_pad[:N]


def _reference(x, adj_dense, weights, a_l, a_r):
    """Pure-JAX f32 reference with the PyTorch module's math (per head)."""
    prec = jax.lax.Precision.HIGHEST
    mask = adj_dense > 0
    maskf = mask.astype(jnp.float32)
    outs = []
    for h_idx in range(weights.shape[0]):
        h = jnp.dot(x, weights[h_idx], precision=prec)
        src = jnp.dot(h, a_l[h_idx, 0], precision=prec)
        dst = jnp.dot(h, a_r[h_idx, 0], precision=prec)
        s = src[:, None] + dst[None, :]
        s = jnp.where(s > 0, s, 0.2 * s)
        masked = jnp.where(mask, s, -1e30)
        rowmax = jnp.max(masked, axis=1, keepdims=True)
        p = jnp.exp(masked - rowmax) * maskf
        alpha = p / (jnp.sum(p, axis=1, keepdims=True) + 1e-16)
        outs.append(jnp.dot(alpha, h, precision=prec))
    return jnp.concatenate(outs, axis=1)


if __name__ == "__main__":
    # Small shapes consistent with the module: N nodes, F_in -> heads x out_perhead
    N = 16
    in_features = 8
    out_features = 8
    heads = 2
    d = out_features // heads  # out_perhead

    key = jax.random.PRNGKey(0)
    k_x, k_adj, k_w, k_a = jax.random.split(key, 4)

    # Node features
    x = jax.random.normal(k_x, (N, in_features), dtype=jnp.float32)

    # Deterministic sparse adjacency (dense 0/1 mask) with self-loops so every
    # node has at least one outgoing edge.
    adj_rand = (jax.random.uniform(k_adj, (N, N)) < 0.25).astype(jnp.float32)
    adj_dense = jnp.maximum(adj_rand, jnp.eye(N, dtype=jnp.float32))

    # Xavier-normal init with gain = calculate_gain('relu') = sqrt(2)
    gain = jnp.sqrt(2.0)
    w_std = gain * jnp.sqrt(2.0 / (in_features + d))
    a_std = gain * jnp.sqrt(2.0 / (1 + 2 * d))
    weights = w_std * jax.random.normal(k_w, (heads, in_features, d), dtype=jnp.float32)
    a_full = a_std * jax.random.normal(k_a, (heads, 1, 2 * d), dtype=jnp.float32)
    a_l = a_full[:, :, :d]   # multiplies h[edge[0]] (source)
    a_r = a_full[:, :, d:]   # multiplies h[edge[1]] (destination)

    out = graph_att_conv(x, adj_dense, weights, a_l, a_r)
    out = jax.block_until_ready(out)

    ref = _reference(x, adj_dense, weights, a_l, a_r)
    assert out.shape == (N, out_features)
    # Projection / aggregation matmuls use bf16 operands (f32 accumulate), so
    # compare against the pure-f32 reference with a tolerance well above bf16
    # rounding but far below any structural error.
    err = float(jnp.max(jnp.abs(out - ref)))
    assert jnp.allclose(out, ref, atol=5e-2, rtol=5e-2), err

    print("KERNEL_OK")
</pallas_src>

<mosaic_0001>
module attributes {stable_mosaic.version = 11 : i64} {
  func.func @_project_kernel(%arg0: i32, %arg1: memref<128x9xf32, #tpu.memory_space<vmem>>, %arg2: memref<9x10xbf16, #tpu.memory_space<vmem>>, %arg3: memref<9x4xf32, #tpu.memory_space<vmem>>, %arg4: memref<128x10xbf16, #tpu.memory_space<vmem>>, %arg5: memref<128x4xf32, #tpu.memory_space<vmem>>) attributes {dimension_semantics = [#tpu.dimension_semantics<parallel>], iteration_bounds = array<i64: 1>, scalar_prefetch = 0 : i64, scratch_operands = 0 : i64, tpu.core_type = #tpu.core_type<tc>, window_params = [{transform_indices = @transform_0, window_bounds = array<i64: 128, 9>}, {pipeline_mode = #tpu.pipeline_mode<synchronous>, transform_indices = @transform_1, window_bounds = array<i64: 9, 10>}, {pipeline_mode = #tpu.pipeline_mode<synchronous>, transform_indices = @transform_2, window_bounds = array<i64: 9, 4>}, {transform_indices = @transform_3, window_bounds = array<i64: 128, 10>}, {transform_indices = @transform_4, window_bounds = array<i64: 128, 4>}]} {
    %c0 = arith.constant 0 : index
    %c0_0 = arith.constant 0 : index
    %0 = vector.load %arg1[%c0, %c0_0] : memref<128x9xf32, #tpu.memory_space<vmem>>, vector<128x9xf32>
    %1 = arith.truncf %0 : vector<128x9xf32> to vector<128x9xbf16>
    %c0_1 = arith.constant 0 : index
    %c0_2 = arith.constant 0 : index
    %2 = vector.load %arg2[%c0_1, %c0_2] : memref<9x10xbf16, #tpu.memory_space<vmem>>, vector<9x10xbf16>
    %cst = arith.constant dense<0.000000e+00> : vector<128x10xf32>
    %3 = tpu.matmul %1, %2, %cst {dimension_numbers = #tpu.dot_dimension_numbers<[1], [0], [0], [1], [0, 0, 1, 1], [], []>} : vector<128x9xbf16>, vector<9x10xbf16>, vector<128x10xf32> -> vector<128x10xf32>
    %4 = arith.truncf %3 : vector<128x10xf32> to vector<128x10xbf16>
    %c0_3 = arith.constant 0 : index
    %c0_4 = arith.constant 0 : index
    %5 = vector.load %arg4[%c0_3, %c0_4] : memref<128x10xbf16, #tpu.memory_space<vmem>>, vector<128x10xbf16>
    tpu.vector_store %arg4[%c0_3, %c0_4], %4 {strides = array<i32>} : memref<128x10xbf16, #tpu.memory_space<vmem>>, vector<128x10xbf16>,
    %c0_5 = arith.constant 0 : index
    %c0_6 = arith.constant 0 : index
    %6 = vector.load %arg3[%c0_5, %c0_6] : memref<9x4xf32, #tpu.memory_space<vmem>>, vector<9x4xf32>
    %cst_7 = arith.constant dense<0.000000e+00> : vector<128x4xf32>
    %7 = tpu.matmul %0, %6, %cst_7 {dimension_numbers = #tpu.dot_dimension_numbers<[1], [0], [0], [1], [0, 0, 1, 1], [], []>} : vector<128x9xf32>, vector<9x4xf32>, vector<128x4xf32> -> vector<128x4xf32>
    %c0_8 = arith.constant 0 : index
    %c0_9 = arith.constant 0 : index
    %8 = vector.load %arg5[%c0_8, %c0_9] : memref<128x4xf32, #tpu.memory_space<vmem>>, vector<128x4xf32>
    tpu.vector_store %arg5[%c0_8, %c0_9], %7 {strides = array<i32>} : memref<128x4xf32, #tpu.memory_space<vmem>>, vector<128x4xf32>,
    return
  }
  func.func @transform_0(%arg0: i32) -> (i32, i32) {
    %c0_i32 = arith.constant 0 : i32
    %c0_i32_0 = arith.constant 0 : i32
    return %arg0, %c0_i32 : i32, i32
  }
  func.func @transform_1(%arg0: i32) -> (i32, i32) {
    %c0_i32 = arith.constant 0 : i32
    %c0_i32_0 = arith.constant 0 : i32
    %c0_i32_1 = arith.constant 0 : i32
    return %c0_i32, %c0_i32_0 : i32, i32
  }
  func.func @transform_2(%arg0: i32) -> (i32, i32) {
    %c0_i32 = arith.constant 0 : i32
    %c0_i32_0 = arith.constant 0 : i32
    %c0_i32_1 = arith.constant 0 : i32
    return %c0_i32, %c0_i32_0 : i32, i32
  }
  func.func @transform_3(%arg0: i32) -> (i32, i32) {
    %c0_i32 = arith.constant 0 : i32
    %c0_i32_0 = arith.constant 0 : i32
    return %arg0, %c0_i32 : i32, i32
  }
  func.func @transform_4(%arg0: i32) -> (i32, i32) {
    %c0_i32 = arith.constant 0 : i32
    %c0_i32_0 = arith.constant 0 : i32
    return %arg0, %c0_i32 : i32, i32
  }
}

</mosaic_0001>

<llo_original>
// kernel: tpu_custom_call.1
$region0: #{tpu_custom_call.1}
  #allocation0 [shape = 'u32[]', space=smem, size = 0x4, offset = 0x4, fixed_abs, tag = 'smem constant byte address 0x4 - core index']
  #allocation1 [shape = 'u32[144,128]{1,0:T(1,128)}', space=vmem, size = 0x12000, scoped, tag = 'internal scratch']
  %s0 = inlined_call_operand.vmem [shape: f32[128,9], index: 0, kind: input, shape index: {}]
  %s1 = inlined_call_operand.vmem [shape: bf16[9,10], index: 1, kind: input, shape index: {}]
  %s2 = inlined_call_operand.vmem [shape: f32[9,4], index: 2, kind: input, shape index: {}]
  %s3 = inlined_call_operand.vmem [shape: bf16[128,10], index: 3, kind: output, shape index: {0}]
  %s4 = inlined_call_operand.vmem [shape: f32[128,4], index: 4, kind: output, shape index: {1}]
  %5 = xla_tuple %s3, %s4
  %s6 = sld [smem:[#allocation0]]
  $region30: #{tpu_custom_call.1} parent=0
    _
  %s8 = ssub.s32 1, %s6
  %s9 = scalar_select 0, %s8, %s6
  // Predicated region
  $region2: #{tpu_custom_call.1} parent=0 // pred_check
    _
  $region3: #{tpu_custom_call.1} parent=0 // pred_check_branch
    %11 = sbr.rel (0) target = $region5
  $region4: #{tpu_custom_call.1} parent=0 // pred_region
    _
  $region5: #{tpu_custom_call.1} parent=0 // pred_fallthru
    _
  // Predicated region
  $region6: #{tpu_custom_call.1} parent=0 // pred_check
    _
  $region7: #{tpu_custom_call.1} parent=0 // pred_check_branch
    %13 = sbr.rel (0) target = $region9
  $region8: #{tpu_custom_call.1} parent=0 // pred_region
    _
  $region9: #{tpu_custom_call.1} parent=0 // pred_fallthru
    _
  // Predicated region
  $region10: #{tpu_custom_call.1} parent=0 // pred_check
    _
  $region11: #{tpu_custom_call.1} parent=0 // pred_check_branch
    %15 = sbr.rel (0) target = $region13
  $region12: #{tpu_custom_call.1} parent=0 // pred_region
    _
  $region13: #{tpu_custom_call.1} parent=0 // pred_fallthru
    _
  %v17 = vld [vmem:[%s0] sm:$0xff]
  %v18 = vld [vmem:[%s0 + $0x8] sm:$0xff]
  %v19 = vld [vmem:[%s0 + $0x10] sm:$0xff]
  %v20 = vld [vmem:[%s0 + $0x18] sm:$0xff]
  %v21 = vld [vmem:[%s0 + $0x20] sm:$0xff]
  %v22 = vld [vmem:[%s0 + $0x28] sm:$0xff]
  %v23 = vld [vmem:[%s0 + $0x30] sm:$0xff]
  %v24 = vld [vmem:[%s0 + $0x38] sm:$0xff]
  %v25 = vld [vmem:[%s0 + $0x40] sm:$0xff]
  %v26 = vld [vmem:[%s0 + $0x48] sm:$0xff]
  %v27 = vld [vmem:[%s0 + $0x50] sm:$0xff]
  %v28 = vld [vmem:[%s0 + $0x58] sm:$0xff]
  %v29 = vld [vmem:[%s0 + $0x60] sm:$0xff]
  %v30 = vld [vmem:[%s0 + $0x68] sm:$0xff]
  %v31 = vld [vmem:[%s0 + $0x70] sm:$0xff]
  %v32 = vld [vmem:[%s0 + $0x78] sm:$0xff]
  %v33 = vpack.c.bf16 %v18, %v17
  %v34 = vpack.c.bf16 %v20, %v19
  %v35 = vpack.c.bf16 %v22, %v21
  %v36 = vpack.c.bf16 %v24, %v23
  %v37 = vpack.c.bf16 %v26, %v25
  %v38 = vpack.c.bf16 %v28, %v27
  %v39 = vpack.c.bf16 %v30, %v29
  %v40 = vpack.c.bf16 %v32, %v31
  %v41 = vld [vmem:[%s1] sm:$0xf]
  %v42 = vld [vmem:[%s1 + $0x4] sm:$0x1]
  %v45 = vunpack.c.l.b16 %v41
  %v46 = vunpack.c.l.b16 %v42
  %v47 = vpack.c.b16 %v46, %v45
  %vm48 = vcmask 72704
  %v50 = vsel %vm48, %v33, 0
  %v53 = vsel %vm48, %v34, 0
  %v56 = vsel %vm48, %v35, 0
  %v59 = vsel %vm48, %v36, 0
  %v62 = vsel %vm48, %v37, 0
  %v65 = vsel %vm48, %v38, 0
  %v68 = vsel %vm48, %v39, 0
  %v71 = vsel %vm48, %v40, 0
  %vm73 = vcmask 1043456
  %vm74 = vcmask 1044480
  %v75 = vsel %vm73, 4294967295, 65535
  %v76 = vsel %vm74, %v75, 0
  %v78 = vand.u32 %v47, %v76
  %80 = vmatprep.subr.bf16.mxu0 0
  %81 = vmatpush1.bf16.msra.mxu0 0
  %82 = vmatprep.subr.bf16.mxu0 0
  %83 = vmatpush1.bf16.msra.mxu0 0
  %84 = vmatprep.subr.bf16.mxu0 0
  %85 = vmatpush1.bf16.msra.mxu0 0
  %86 = vmatprep.subr.bf16.mxu0 0
  %87 = vmatpush1.bf16.msra.mxu0 0
  %88 = vmatprep.subr.bf16.mxu0 0
  %89 = vmatpush1.bf16.msra.mxu0 0
  %90 = vmatprep.subr.bf16.mxu0 0
  %91 = vmatpush1.bf16.msra.mxu0 0
  %92 = vmatprep.subr.bf16.mxu0 0
  %93 = vmatpush1.bf16.msra.mxu0 0
  %94 = vmatprep.subr.bf16.mxu0 0
  %95 = vmatpush1.bf16.msra.mxu0 %v78
  %96 = vmatprep.subr.bf16.mxu0 0
  %97 = vmatpush2.bf16.msra.mxu0 0
  %98 = vmatprep.subr.bf16.mxu0 0
  %99 = vmatpush2.bf16.msra.mxu0 0
  %100 = vmatprep.subr.bf16.mxu0 0
  %101 = vmatpush2.bf16.msra.mxu0 0
  %102 = vmatprep.subr.bf16.mxu0 0
  %103 = vmatpush2.bf16.msra.mxu0 0
  %104 = vmatprep.subr.bf16.mxu0 0
  %105 = vmatpush2.bf16.msra.mxu0 0
  %106 = vmatprep.subr.bf16.mxu0 0
  %107 = vmatpush2.bf16.msra.mxu0 0
  %108 = vmatprep.subr.bf16.mxu0 0
  %109 = vmatpush2.bf16.msra.mxu0 0
  %110 = vmatprep.subr.bf16.mxu0 0
  %111 = vmatpush2.bf16.msra.mxu0 0
  %112 = vmatprep.mubr.bf16.mxu0 0
  %113 = vmatmul.mubr.bf16.gmra.mxu0 %v50
  %v114 = vpop.f32.mrf.mxu0
  %v115 = vadd.f32 0.0, %v114
  %v116 = vpop.f32.mrf.mxu0
  %v117 = vpop.f32.mrf.mxu0
  %v118 = vadd.f32 0.0, %v117
  %v119 = vpop.f32.mrf.mxu0
  %120 = vmatprep.mubr.bf16.mxu0 0
  %121 = vmatmul.mubr.bf16.gmra.mxu0 %v53
  %v122 = vpop.f32.mrf.mxu0
  %v123 = vadd.f32 0.0, %v122
  %v124 = vpop.f32.mrf.mxu0
  %v125 = vpop.f32.mrf.mxu0
  %v126 = vadd.f32 0.0, %v125
  %v127 = vpop.f32.mrf.mxu0
  %128 = vmatprep.mubr.bf16.mxu0 0
  %129 = vmatmul.mubr.bf16.gmra.mxu0 %v56
  %v130 = vpop.f32.mrf.mxu0
  %v131 = vadd.f32 0.0, %v130
  %v132 = vpop.f32.mrf.mxu0
  %v133 = vpop.f32.mrf.mxu0
  %v134 = vadd.f32 0.0, %v133
  %v135 = vpop.f32.mrf.mxu0
  %136 = vmatprep.mubr.bf16.mxu0 0
  %137 = vmatmul.mubr.bf16.gmra.mxu0 %v59
  %v138 = vpop.f32.mrf.mxu0
  %v139 = vadd.f32 0.0, %v138
  %v140 = vpop.f32.mrf.mxu0
  %v141 = vpop.f32.mrf.mxu0
  %v142 = vadd.f32 0.0, %v141
  %v143 = vpop.f32.mrf.mxu0
  %144 = vmatprep.mubr.bf16.mxu0 0
  %145 = vmatmul.mubr.bf16.gmra.mxu0 %v62
  %v146 = vpop.f32.mrf.mxu0
  %v147 = vadd.f32 0.0, %v146
  %v148 = vpop.f32.mrf.mxu0
  %v149 = vpop.f32.mrf.mxu0
  %v150 = vadd.f32 0.0, %v149
  %v151 = vpop.f32.mrf.mxu0
  %152 = vmatprep.mubr.bf16.mxu0 0
  %153 = vmatmul.mubr.bf16.gmra.mxu0 %v65
  %v154 = vpop.f32.mrf.mxu0
  %v155 = vadd.f32 0.0, %v154
  %v156 = vpop.f32.mrf.mxu0
  %v157 = vpop.f32.mrf.mxu0
  %v158 = vadd.f32 0.0, %v157
  %v159 = vpop.f32.mrf.mxu0
  %160 = vmatprep.mubr.bf16.mxu0 0
  %161 = vmatmul.mubr.bf16.gmra.mxu0 %v68
  %v162 = vpop.f32.mrf.mxu0
  %v163 = vadd.f32 0.0, %v162
  %v164 = vpop.f32.mrf.mxu0
  %v165 = vpop.f32.mrf.mxu0
  %v166 = vadd.f32 0.0, %v165
  %v167 = vpop.f32.mrf.mxu0
  %168 = vmatprep.mubr.bf16.mxu0 0
  %169 = vmatmul.mubr.bf16.gmra.mxu0 %v71
  %v170 = vpop.f32.mrf.mxu0
  %v171 = vadd.f32 0.0, %v170
  %v172 = vpop.f32.mrf.mxu0
  %v173 = vpop.f32.mrf.mxu0
  %v174 = vadd.f32 0.0, %v173
  %v175 = vpop.f32.mrf.mxu0
  %176 = vdwg.mxu0
  %v177 = vpack.c.bf16 %v118, %v115
  %v178 = vpack.c.bf16 %v126, %v123
  %v179 = vpack.c.bf16 %v134, %v131
  %v180 = vpack.c.bf16 %v142, %v139
  %v181 = vpack.c.bf16 %v150, %v147
  %v182 = vpack.c.bf16 %v158, %v155
  %v183 = vpack.c.bf16 %v166, %v163
  %v184 = vpack.c.bf16 %v174, %v171
  %v193 = vunpack.c.l.b16 %v177
  %v194 = vunpack.c.h.b16 %v177
  %v195 = vunpack.c.l.b16 %v178
  %v196 = vunpack.c.h.b16 %v178
  %v197 = vunpack.c.l.b16 %v179
  %v198 = vunpack.c.h.b16 %v179
  %v199 = vunpack.c.l.b16 %v180
  %v200 = vunpack.c.h.b16 %v180
  %v201 = vunpack.c.l.b16 %v181
  %v202 = vunpack.c.h.b16 %v181
  %v203 = vunpack.c.l.b16 %v182
  %v204 = vunpack.c.h.b16 %v182
  %v205 = vunpack.c.l.b16 %v183
  %v206 = vunpack.c.h.b16 %v183
  %v207 = vunpack.c.l.b16 %v184
  %v208 = vunpack.c.h.b16 %v184
  %v209 = vpack.c.b16 %v193, %v193
  %v210 = vpack.c.b16 %v194, %v194
  %v211 = vpack.c.b16 %v195, %v195
  %v212 = vpack.c.b16 %v196, %v196
  %v213 = vpack.c.b16 %v197, %v197
  %v214 = vpack.c.b16 %v198, %v198
  %v215 = vpack.c.b16 %v199, %v199
  %v216 = vpack.c.b16 %v200, %v200
  %v217 = vpack.c.b16 %v201, %v201
  %v218 = vpack.c.b16 %v202, %v202
  %v219 = vpack.c.b16 %v203, %v203
  %v220 = vpack.c.b16 %v204, %v204
  %v221 = vpack.c.b16 %v205, %v205
  %v222 = vpack.c.b16 %v206, %v206
  %v223 = vpack.c.b16 %v207, %v207
  %v224 = vpack.c.b16 %v208, %v208
  %vm241 = vcmask 76800
  %242 = vst.msk [vmem:[%s3] sm:$0xf] %vm241, %v209
  %243 = vst.msk [vmem:[%s3 + $0x4] sm:$0xf] %vm241, %v210
  %244 = vst.msk [vmem:[%s3 + $0x8] sm:$0xf] %vm241, %v211
  %245 = vst.msk [vmem:[%s3 + $0xc] sm:$0xf] %vm241, %v212
  %246 = vst.msk [vmem:[%s3 + $0x10] sm:$0xf] %vm241, %v213
  %247 = vst.msk [vmem:[%s3 + $0x14] sm:$0xf] %vm241, %v214
  %248 = vst.msk [vmem:[%s3 + $0x18] sm:$0xf] %vm241, %v215
  %249 = vst.msk [vmem:[%s3 + $0x1c] sm:$0xf] %vm241, %v216
  %250 = vst.msk [vmem:[%s3 + $0x20] sm:$0xf] %vm241, %v217
  %251 = vst.msk [vmem:[%s3 + $0x24] sm:$0xf] %vm241, %v218
  %252 = vst.msk [vmem:[%s3 + $0x28] sm:$0xf] %vm241, %v219
  %253 = vst.msk [vmem:[%s3 + $0x2c] sm:$0xf] %vm241, %v220
  %254 = vst.msk [vmem:[%s3 + $0x30] sm:$0xf] %vm241, %v221
  %255 = vst.msk [vmem:[%s3 + $0x34] sm:$0xf] %vm241, %v222
  %256 = vst.msk [vmem:[%s3 + $0x38] sm:$0xf] %vm241, %v223
  %257 = vst.msk [vmem:[%s3 + $0x3c] sm:$0xf] %vm241, %v224
  %v258 = vld [vmem:[%s2] sm:$0xff]
  %v259 = vld [vmem:[%s2 + $0x8] sm:$0x1]
  %v261 = vsel %vm48, %v17, 0
  %v264 = vsel %vm48, %v18, 0
  %v267 = vsel %vm48, %v19, 0
  %v270 = vsel %vm48, %v20, 0
  %v273 = vsel %vm48, %v21, 0
  %v276 = vsel %vm48, %v22, 0
  %v279 = vsel %vm48, %v23, 0
  %v282 = vsel %vm48, %v24, 0
  %v285 = vsel %vm48, %v25, 0
  %v288 = vsel %vm48, %v26, 0
  %v291 = vsel %vm48, %v27, 0
  %v294 = vsel %vm48, %v28, 0
  %v297 = vsel %vm48, %v29, 0
  %v300 = vsel %vm48, %v30, 0
  %v303 = vsel %vm48, %v31, 0
  %v306 = vsel %vm48, %v32, 0
  %vm308 = vcmask 1040384
  %v310 = vsel %vm308, %v259, 0
  %312 = vmatprep.subr.mxu0 0.0
  %313 = vmatpush1.msra.mxu0 0.0
  %314 = vmatprep.subr.mxu0 0.0
  %315 = vmatpush1.msra.mxu0 0.0
  %316 = vmatprep.subr.mxu0 0.0
  %317 = vmatpush1.msra.mxu0 0.0
  %318 = vmatprep.subr.mxu0 0.0
  %319 = vmatpush1.msra.mxu0 0.0
  %320 = vmatprep.subr.mxu0 0.0
  %321 = vmatpush1.msra.mxu0 0.0
  %322 = vmatprep.subr.mxu0 0.0
  %323 = vmatpush1.msra.mxu0 0.0
  %324 = vmatprep.subr.mxu0 0.0
  %325 = vmatpush1.msra.mxu0 0.0
  %326 = vmatprep.subr.mxu0 0.0
  %327 = vmatpush1.msra.mxu0 0.0
  %328 = vmatprep.subr.mxu0 0.0
  %329 = vmatpush1.msra.mxu0 0.0
  %330 = vmatprep.subr.mxu0 0.0
  %331 = vmatpush1.msra.mxu0 0.0
  %332 = vmatprep.subr.mxu0 0.0
  %333 = vmatpush1.msra.mxu0 0.0
  %334 = vmatprep.subr.mxu0 0.0
  %335 = vmatpush1.msra.mxu0 0.0
  %336 = vmatprep.subr.mxu0 0.0
  %337 = vmatpush1.msra.mxu0 0.0
  %338 = vmatprep.subr.mxu0 0.0
  %339 = vmatpush1.msra.mxu0 0.0
  %340 = vmatprep.subr.mxu0 0.0
  %341 = vmatpush1.msra.mxu0 %v310
  %342 = vmatprep.subr.mxu0 0.0
  %343 = vmatpush1.msra.mxu0 %v258
  %344 = vmatprep.subr.mxu0 0.0
  %345 = vmatpush2.msra.mxu0 0.0
  %346 = vmatprep.subr.mxu0 0.0
  %347 = vmatpush2.msra.mxu0 0.0
  %348 = vmatprep.subr.mxu0 0.0
  %349 = vmatpush2.msra.mxu0 0.0
  %350 = vmatprep.subr.mxu0 0.0
  %351 = vmatpush2.msra.mxu0 0.0
  %352 = vmatprep.subr.mxu0 0.0
  %353 = vmatpush2.msra.mxu0 0.0
  %354 = vmatprep.subr.mxu0 0.0
  %355 = vmatpush2.msra.mxu0 0.0
  %356 = vmatprep.subr.mxu0 0.0
  %357 = vmatpush2.msra.mxu0 0.0
  %358 = vmatprep.subr.mxu0 0.0
  %359 = vmatpush2.msra.mxu0 0.0
  %360 = vmatprep.subr.mxu0 0.0
  %361 = vmatpush2.msra.mxu0 0.0
  %362 = vmatprep.subr.mxu0 0.0
  %363 = vmatpush2.msra.mxu0 0.0
  %364 = vmatprep.subr.mxu0 0.0
  %365 = vmatpush2.msra.mxu0 0.0
  %366 = vmatprep.subr.mxu0 0.0
  %367 = vmatpush2.msra.mxu0 0.0
  %368 = vmatprep.subr.mxu0 0.0
  %369 = vmatpush2.msra.mxu0 0.0
  %370 = vmatprep.subr.mxu0 0.0
  %371 = vmatpush2.msra.mxu0 0.0
  %372 = vmatprep.subr.mxu0 0.0
  %373 = vmatpush2.msra.mxu0 0.0
  %374 = vmatprep.subr.mxu0 0.0
  %375 = vmatpush2.msra.mxu0 0.0
  %376 = vmatprep.mubr.f32.mxu0 0.0
  %377 = vmatmul.mubr.f32.gmra.mxu0 %v261
  %v378 = vpop.f32.mrf.mxu0
  %v379 = vadd.f32 0.0, %v378
  %v380 = vpop.f32.mrf.mxu0
  %381 = vmatprep.mubr.f32.mxu0 0.0
  %382 = vmatmul.mubr.f32.gmra.mxu0 %v264
  %v383 = vpop.f32.mrf.mxu0
  %v384 = vadd.f32 0.0, %v383
  %v385 = vpop.f32.mrf.mxu0
  %386 = vmatprep.mubr.f32.mxu0 0.0
  %387 = vmatmul.mubr.f32.gmra.mxu0 %v267
  %v388 = vpop.f32.mrf.mxu0
  %v389 = vadd.f32 0.0, %v388
  %v390 = vpop.f32.mrf.mxu0
  %391 = vmatprep.mubr.f32.mxu0 0.0
  %392 = vmatmul.mubr.f32.gmra.mxu0 %v270
  %v393 = vpop.f32.mrf.mxu0
  %v394 = vadd.f32 0.0, %v393
  %v395 = vpop.f32.mrf.mxu0
  %396 = vmatprep.mubr.f32.mxu0 0.0
  %397 = vmatmul.mubr.f32.gmra.mxu0 %v273
  %v398 = vpop.f32.mrf.mxu0
  %v399 = vadd.f32 0.0, %v398
  %v400 = vpop.f32.mrf.mxu0
  %401 = vmatprep.mubr.f32.mxu0 0.0
  %402 = vmatmul.mubr.f32.gmra.mxu0 %v276
  %v403 = vpop.f32.mrf.mxu0
  %v404 = vadd.f32 0.0, %v403
  %v405 = vpop.f32.mrf.mxu0
  %406 = vmatprep.mubr.f32.mxu0 0.0
  %407 = vmatmul.mubr.f32.gmra.mxu0 %v279
  %v408 = vpop.f32.mrf.mxu0
  %v409 = vadd.f32 0.0, %v408
  %v410 = vpop.f32.mrf.mxu0
  %411 = vmatprep.mubr.f32.mxu0 0.0
  %412 = vmatmul.mubr.f32.gmra.mxu0 %v282
  %v413 = vpop.f32.mrf.mxu0
  %v414 = vadd.f32 0.0, %v413
  %v415 = vpop.f32.mrf.mxu0
  %416 = vmatprep.mubr.f32.mxu0 0.0
  %417 = vmatmul.mubr.f32.gmra.mxu0 %v285
  %v418 = vpop.f32.mrf.mxu0
  %v419 = vadd.f32 0.0, %v418
  %v420 = vpop.f32.mrf.mxu0
  %421 = vmatprep.mubr.f32.mxu0 0.0
  %422 = vmatmul.mubr.f32.gmra.mxu0 %v288
  %v423 = vpop.f32.mrf.mxu0
  %v424 = vadd.f32 0.0, %v423
  %v425 = vpop.f32.mrf.mxu0
  %426 = vmatprep.mubr.f32.mxu0 0.0
  %427 = vmatmul.mubr.f32.gmra.mxu0 %v291
  %v428 = vpop.f32.mrf.mxu0
  %v429 = vadd.f32 0.0, %v428
  %v430 = vpop.f32.mrf.mxu0
  %431 = vmatprep.mubr.f32.mxu0 0.0
  %432 = vmatmul.mubr.f32.gmra.mxu0 %v294
  %v433 = vpop.f32.mrf.mxu0
  %v434 = vadd.f32 0.0, %v433
  %v435 = vpop.f32.mrf.mxu0
  %436 = vmatprep.mubr.f32.mxu0 0.0
  %437 = vmatmul.mubr.f32.gmra.mxu0 %v297
  %v438 = vpop.f32.mrf.mxu0
  %v439 = vadd.f32 0.0, %v438
  %v440 = vpop.f32.mrf.mxu0
  %441 = vmatprep.mubr.f32.mxu0 0.0
  %442 = vmatmul.mubr.f32.gmra.mxu0 %v300
  %v443 = vpop.f32.mrf.mxu0
  %v444 = vadd.f32 0.0, %v443
  %v445 = vpop.f32.mrf.mxu0
  %446 = vmatprep.mubr.f32.mxu0 0.0
  %447 = vmatmul.mubr.f32.gmra.mxu0 %v303
  %v448 = vpop.f32.mrf.mxu0
  %v449 = vadd.f32 0.0, %v448
  %v450 = vpop.f32.mrf.mxu0
  %451 = vmatprep.mubr.f32.mxu0 0.0
  %452 = vmatmul.mubr.f32.gmra.mxu0 %v306
  %v453 = vpop.f32.mrf.mxu0
  %v454 = vadd.f32 0.0, %v453
  %v455 = vpop.f32.mrf.mxu0
  %456 = vdwg.mxu0
  %vm457 = vcmask 31744
  %458 = vst.msk [vmem:[%s4] sm:$0xff] %vm457, %v379
  %459 = vst.msk [vmem:[%s4 + $0x8] sm:$0xff] %vm457, %v384
  %460 = vst.msk [vmem:[%s4 + $0x10] sm:$0xff] %vm457, %v389
  %461 = vst.msk [vmem:[%s4 + $0x18] sm:$0xff] %vm457, %v394
  %462 = vst.msk [vmem:[%s4 + $0x20] sm:$0xff] %vm457, %v399
  %463 = vst.msk [vmem:[%s4 + $0x28] sm:$0xff] %vm457, %v404
  %464 = vst.msk [vmem:[%s4 + $0x30] sm:$0xff] %vm457, %v409
  %465 = vst.msk [vmem:[%s4 + $0x38] sm:$0xff] %vm457, %v414
  %466 = vst.msk [vmem:[%s4 + $0x40] sm:$0xff] %vm457, %v419
  %467 = vst.msk [vmem:[%s4 + $0x48] sm:$0xff] %vm457, %v424
  %468 = vst.msk [vmem:[%s4 + $0x50] sm:$0xff] %vm457, %v429
  %469 = vst.msk [vmem:[%s4 + $0x58] sm:$0xff] %vm457, %v434
  %470 = vst.msk [vmem:[%s4 + $0x60] sm:$0xff] %vm457, %v439
  %471 = vst.msk [vmem:[%s4 + $0x68] sm:$0xff] %vm457, %v444
  %472 = vst.msk [vmem:[%s4 + $0x70] sm:$0xff] %vm457, %v449
  %473 = vst.msk [vmem:[%s4 + $0x78] sm:$0xff] %vm457, %v454
  // Predicated region
  $region14: #{tpu_custom_call.1} parent=0 // pred_check
    _
  $region15: #{tpu_custom_call.1} parent=0 // pred_check_branch
    %475 = sbr.rel (0) target = $region17
  $region16: #{tpu_custom_call.1} parent=0 // pred_region
    _
  $region17: #{tpu_custom_call.1} parent=0 // pred_fallthru
    _
  // Predicated region
  $region18: #{tpu_custom_call.1} parent=0 // pred_check
    _
  $region19: #{tpu_custom_call.1} parent=0 // pred_check_branch
    %477 = sbr.rel (0) target = $region21
  $region20: #{tpu_custom_call.1} parent=0 // pred_region
    _
  $region21: #{tpu_custom_call.1} parent=0 // pred_fallthru
    _
  // Predicated region
  $region22: #{tpu_custom_call.1} parent=0 // pred_check
    _
  $region23: #{tpu_custom_call.1} parent=0 // pred_check_branch
    %479 = sbr.rel (0) target = $region25
  $region24: #{tpu_custom_call.1} parent=0 // pred_region
    _
  $region25: #{tpu_custom_call.1} parent=0 // pred_fallthru
    _
  // Predicated region
  $region26: #{tpu_custom_call.1} parent=0 // pred_check
    _
  $region27: #{tpu_custom_call.1} parent=0 // pred_check_branch
    %481 = sbr.rel (0) target = $region29
  $region28: #{tpu_custom_call.1} parent=0 // pred_region
    _
  $region29: #{tpu_custom_call.1} parent=0 // pred_fallthru
    _

</llo_original>
